<compile_context>
chip_gen: v6e
topology: v6e:2x2x1
jax: 0.10.0
libtpu: 0.0.40
codegen_flags: <defaults>
</compile_context>

<pallas_src>
import math

import jax
import jax.numpy as jnp
from jax import lax
from jax.experimental import pallas as pl
from jax.experimental.pallas import tpu as pltpu


# ---------------------------------------------------------------------------
# Fused Pallas kernel: conv(share+private, all kernel sizes) + mask + max-pool
#                      + bias/ReLU + fused fc_target/fc_task, per batch tile.
# ---------------------------------------------------------------------------
def _generate_fused_kernel(emb_ref, w_taps_ref, b_conv_ref, kcol_ref,
                           w_head_ref, b_head_ref, out_ref):
    k_max = w_taps_ref.shape[0]
    C2 = w_taps_ref.shape[2]                # 2 * sum(num_channels)
    S_pad = emb_ref.shape[1]
    S = S_pad - (k_max - 1)                 # original sequence length

    # --- Conv stage: k_max accumulated shifted matmuls.  Each tap is a single
    #     wide (N = C2) bf16 MXU matmul with f32 accumulation; no im2col copy.
    def tap(j):
        return lax.dot_general(
            emb_ref[:, j:j + S, :],          # (B_t, S, D)   bf16, shifted view
            w_taps_ref[j],                   # (D, C2)       bf16 tap slab
            dimension_numbers=(((2,), (0,)), ((), ())),
            preferred_element_type=jnp.float32)   # -> (B_t, S, C2) f32

    y = tap(0)
    for j in range(1, k_max):
        y = y + tap(j)

    # --- Mask positions past each column's valid window length, then global
    #     max-pool over time (AdaptiveMaxPool1d(1)).
    pos = lax.broadcasted_iota(jnp.int32, (S, C2), 0)      # (S, C2)
    vlen = (S + 1) - kcol_ref[...]                         # (1, C2): L_i = S - k_i + 1
    neg = jnp.where(pos < vlen, 0.0, -1e30)                # (S, C2) f32 additive mask
    pooled = jnp.max(y + neg, axis=1)                      # (B_t, C2) f32

    # --- bias + ReLU hoisted after the pool (constant bias, monotone ops).
    feats = jnp.maximum(pooled + b_conv_ref[...], 0.0)     # (B_t, C2) f32

    # --- Fused fc_target + fc_task (lane-padded head slab), bf16 operands,
    #     f32 accumulation.
    out = jnp.dot(feats.astype(jnp.bfloat16), w_head_ref[...],
                  preferred_element_type=jnp.float32)      # (B_t, OT_pad)
    out_ref[0] = (out + b_head_ref[...]).astype(out_ref.dtype)


def fused_generate(x, w_taps, b_conv, k_cols, w_head, b_head, *, b_tile):
    """x: (B_pad, S_pad, D) bf16 with B_pad % b_tile == 0."""
    B_pad, S_pad, D = x.shape
    k_max, _, C2 = w_taps.shape
    OT_pad = w_head.shape[1]
    grid = (B_pad // b_tile,)

    grid_spec = pltpu.PrefetchScalarGridSpec(
        num_scalar_prefetch=0,
        grid=grid,
        in_specs=[
            # emb tile streams over the batch (double-buffered by Pallas)
            pl.BlockSpec((b_tile, S_pad, D), lambda i: (i, 0, 0)),
            # weight/bias slabs: constant index_map -> VMEM-resident, fetched once
            pl.BlockSpec((k_max, D, C2), lambda i: (0, 0, 0)),
            pl.BlockSpec((1, C2), lambda i: (0, 0)),
            pl.BlockSpec((1, C2), lambda i: (0, 0)),
            pl.BlockSpec((C2, OT_pad), lambda i: (0, 0)),
            pl.BlockSpec((1, OT_pad), lambda i: (0, 0)),
        ],
        out_specs=pl.BlockSpec((1, b_tile, OT_pad), lambda i: (i, 0, 0)),
    )

    return pl.pallas_call(
        _generate_fused_kernel,
        out_shape=jax.ShapeDtypeStruct((grid[0], b_tile, OT_pad), jnp.float32),
        grid_spec=grid_spec,
        compiler_params=pltpu.CompilerParams(
            dimension_semantics=("parallel",),
            # above v5e's 16 MiB scoped default, still leaves headroom within
            # v7x's 64 MiB physical VMEM.  (B_tile must be sized so that
            # 2x emb tile + resident weights + (B_tile, S, C2) fits this.)
            vmem_limit_bytes=32 * 1024 * 1024,
        ),
    )(x, w_taps, b_conv, k_cols, w_head, b_head)


# ---------------------------------------------------------------------------
# Parameter construction (matches PyTorch init semantics) + layout prep
# ---------------------------------------------------------------------------
def init_cnn_layers(key, num_channels, kernel_sizes, glove_dim):
    """One (K, D, C) weight + (1, C) bias per conv: kaiming_normal_ / uniform_(0,0)."""
    params = []
    for c, k in zip(num_channels, kernel_sizes):
        key, wk = jax.random.split(key)
        fan_in = glove_dim * k
        std = math.sqrt(2.0 / fan_in)                        # kaiming_normal_
        w = std * jax.random.normal(wk, (k, glove_dim, c), jnp.float32)
        b = jnp.zeros((1, c), jnp.float32)                   # uniform_(0, 0)
        params.append((w, b))
    return key, params


def init_linear(key, fan_in, fan_out, xavier=False):
    key, wk, bk = jax.random.split(key, 3)
    if xavier:
        std = math.sqrt(2.0 / (fan_in + fan_out))            # xavier_normal_
        w = std * jax.random.normal(wk, (fan_in, fan_out), jnp.float32)
    else:
        bound = 1.0 / math.sqrt(fan_in)
        w = jax.random.uniform(wk, (fan_in, fan_out), jnp.float32, -bound, bound)
    bound = 1.0 / math.sqrt(fan_in)
    b = jax.random.uniform(bk, (1, fan_out), jnp.float32, -bound, bound)
    return key, (w, b)


def init_generate(key, *, num_channels, kernel_sizes, distilbert_dim,
                  task_num, output_size):
    key, share = init_cnn_layers(key, num_channels, kernel_sizes, distilbert_dim)
    # NOTE: nn.ModuleList([CNN_layers(...)] * task_num) repeats the SAME module,
    # so every "private" branch shares one parameter set (task_id immaterial).
    key, private = init_cnn_layers(key, num_channels, kernel_sizes, distilbert_dim)
    tot = sum(num_channels)
    key, fc_target = init_linear(key, tot, output_size, xavier=True)
    key, fc_task = init_linear(key, tot, task_num, xavier=False)
    return {"share": share, "private": private,
            "fc_target": fc_target, "fc_task": fc_task}


def prep_fused_params(params, *, kernel_sizes, num_channels, distilbert_dim,
                      output_size, task_num):
    """Pack parameters into the bf16 slabs the fused kernel consumes."""
    D = distilbert_dim
    k_max = max(kernel_sizes)
    tot = sum(num_channels)
    C2 = 2 * tot
    O, T = output_size, task_num
    OT_pad = ((O + T + 127) // 128) * 128                    # lane-dense output

    # Per-tap conv slab: columns [0, tot) = share feats, [tot, 2*tot) = private
    # feats (both in kernel-size order); taps j >= k_i zero-padded.
    w_taps = jnp.zeros((k_max, D, C2), jnp.float32)
    b_conv = jnp.zeros((1, C2), jnp.float32)
    k_cols = jnp.zeros((1, C2), jnp.int32)
    off = 0
    for (ws, bs), (wp, bp), k, c in zip(params["share"], params["private"],
                                        kernel_sizes, num_channels):
        w_taps = w_taps.at[:k, :, off:off + c].set(ws)
        w_taps = w_taps.at[:k, :, tot + off:tot + off + c].set(wp)
        b_conv = b_conv.at[:, off:off + c].set(bs)
        b_conv = b_conv.at[:, tot + off:tot + off + c].set(bp)
        k_cols = k_cols.at[:, off:off + c].set(k)
        k_cols = k_cols.at[:, tot + off:tot + off + c].set(k)
        off += c

    # Fused, lane-padded head: share feats -> fc_task, private feats -> fc_target.
    wt, bt = params["fc_target"]     # (tot, O), (1, O)
    wk, bk = params["fc_task"]       # (tot, T), (1, T)
    w_head = jnp.zeros((C2, OT_pad), jnp.float32)
    w_head = w_head.at[0:tot, O:O + T].set(wk)               # share   -> task
    w_head = w_head.at[tot:C2, 0:O].set(wt)                  # private -> target
    b_head = jnp.zeros((1, OT_pad), jnp.float32)
    b_head = b_head.at[:, 0:O].set(bt)
    b_head = b_head.at[:, O:O + T].set(bk)

    return {"w_taps": w_taps.astype(jnp.bfloat16),
            "b_conv": b_conv,
            "k_cols": k_cols,
            "w_head": w_head.astype(jnp.bfloat16),
            "b_head": b_head}


def generate_forward(fused, emb, task_id, *, output_size, task_num, b_tile=8):
    # All private branches alias the same weights -> task_id immaterial.
    del task_id
    B, S, D = emb.shape
    k_max = int(fused["w_taps"].shape[0])
    assert S >= k_max, "sequence shorter than the largest conv kernel"

    bt = max(1, min(b_tile, B))
    G = -(-B // bt)
    B_pad = G * bt
    S_pad = S + k_max - 1            # zero end-pad so every tap's shifted view is in-bounds
    x = jnp.zeros((B_pad, S_pad, D), jnp.bfloat16)
    x = x.at[:B, :S, :].set(emb.astype(jnp.bfloat16))

    out = fused_generate(x, fused["w_taps"], fused["b_conv"], fused["k_cols"],
                         fused["w_head"], fused["b_head"], b_tile=bt)
    OT_pad = fused["w_head"].shape[1]
    out = out.reshape(B_pad, OT_pad)[:B]                     # drop batch/lane padding
    target = out[:, :output_size]
    task = out[:, output_size:output_size + task_num]
    return [target, task, None]


# ---------------------------------------------------------------------------
# Pure-JAX reference (mirrors the PyTorch forward) for a correctness check
# ---------------------------------------------------------------------------
def reference_forward(params, emb, kernel_sizes, output_size,
                      feat_dtype=jnp.float32):
    def branch(conv_params):
        feats = []
        for (w, b), k in zip(conv_params, kernel_sizes):
            S = emb.shape[1]
            L = S - k + 1
            acc = sum(jnp.einsum("bld,dc->blc", emb[:, j:j + L, :], w[j])
                      for j in range(k))
            acc = jnp.maximum(acc + b.reshape(1, 1, -1), 0.0)
            feats.append(jnp.max(acc, axis=1))
        f = jnp.concatenate(feats, axis=1)
        return f.astype(feat_dtype).astype(jnp.float32)

    share_feat = branch(params["share"])
    private_feat = branch(params["private"])
    wt, bt = params["fc_target"]
    wk, bk = params["fc_task"]
    return private_feat @ wt + bt, share_feat @ wk + bk


# ---------------------------------------------------------------------------
if __name__ == "__main__":
    # small, module-consistent config
    B, S = 4, 8                 # batch, sequence length (post-tokenizer)
    distilbert_dim = 32
    num_channels = [8, 8]
    kernel_sizes = [3, 4]
    task_num = 3
    output_size = 4
    b_tile = 2                  # -> 2 grid steps: exercises the pipelined batch grid

    key = jax.random.PRNGKey(0)
    key, ek = jax.random.split(key)
    # synthetic DistilBert output embedding (B, S, D)
    emb = jax.random.normal(ek, (B, S, distilbert_dim), jnp.float32)

    params = init_generate(key,
                           num_channels=num_channels,
                           kernel_sizes=kernel_sizes,
                           distilbert_dim=distilbert_dim,
                           task_num=task_num,
                           output_size=output_size)
    fused = prep_fused_params(params,
                              kernel_sizes=kernel_sizes,
                              num_channels=num_channels,
                              distilbert_dim=distilbert_dim,
                              output_size=output_size,
                              task_num=task_num)

    target, task, _ = generate_forward(fused, emb, task_id=0,
                                       output_size=output_size,
                                       task_num=task_num,
                                       b_tile=b_tile)
    target = jax.block_until_ready(target)
    task = jax.block_until_ready(task)

    assert target.shape == (B, output_size), target.shape
    assert task.shape == (B, task_num), task.shape
    assert jnp.all(jnp.isfinite(target)) and jnp.all(jnp.isfinite(task))

    # Reference on the SAME bf16-rounded operands (f32 math everywhere else),
    # mirroring the kernel's intentional quantization points; this keeps the
    # comparison tight so it isolates kernel-logic errors.
    def q(a):
        return a.astype(jnp.bfloat16).astype(jnp.float32)

    params_q = {
        "share": [(q(w), b) for (w, b) in params["share"]],
        "private": [(q(w), b) for (w, b) in params["private"]],
        "fc_target": (q(params["fc_target"][0]), params["fc_target"][1]),
        "fc_task": (q(params["fc_task"][0]), params["fc_task"][1]),
    }
    ref_target, ref_task = reference_forward(params_q, q(emb), kernel_sizes,
                                             output_size,
                                             feat_dtype=jnp.bfloat16)
    assert jnp.allclose(target, ref_target, rtol=2e-3, atol=2e-3), \
        float(jnp.max(jnp.abs(target - ref_target)))
    assert jnp.allclose(task, ref_task, rtol=2e-3, atol=2e-3), \
        float(jnp.max(jnp.abs(task - ref_task)))
    print("KERNEL_OK")
</pallas_src>

<mosaic_0001>
module attributes {stable_mosaic.version = 11 : i64} {
  func.func @_generate_fused_kernel(%arg0: i32, %arg1: memref<2x11x32xbf16, #tpu.memory_space<vmem>>, %arg2: memref<4x32x32xbf16, #tpu.memory_space<vmem>>, %arg3: memref<1x32xf32, #tpu.memory_space<vmem>>, %arg4: memref<1x32xi32, #tpu.memory_space<vmem>>, %arg5: memref<32x128xbf16, #tpu.memory_space<vmem>>, %arg6: memref<1x128xf32, #tpu.memory_space<vmem>>, %arg7: memref<1x2x128xf32, #tpu.memory_space<vmem>>) attributes {dimension_semantics = [#tpu.dimension_semantics<parallel>], iteration_bounds = array<i64: 2>, scalar_prefetch = 0 : i64, scratch_operands = 0 : i64, tpu.core_type = #tpu.core_type<tc>, window_params = [{transform_indices = @transform_0, window_bounds = array<i64: 2, 11, 32>}, {pipeline_mode = #tpu.pipeline_mode<synchronous>, transform_indices = @transform_1, window_bounds = array<i64: 4, 32, 32>}, {pipeline_mode = #tpu.pipeline_mode<synchronous>, transform_indices = @transform_2, window_bounds = array<i64: 1, 32>}, {pipeline_mode = #tpu.pipeline_mode<synchronous>, transform_indices = @transform_3, window_bounds = array<i64: 1, 32>}, {pipeline_mode = #tpu.pipeline_mode<synchronous>, transform_indices = @transform_4, window_bounds = array<i64: 32, 128>}, {pipeline_mode = #tpu.pipeline_mode<synchronous>, transform_indices = @transform_5, window_bounds = array<i64: 1, 128>}, {transform_indices = @transform_6, window_bounds = array<i64: 1, 2, 128>}]} {
    %c0 = arith.constant 0 : index
    %c0_0 = arith.constant 0 : index
    %c0_1 = arith.constant 0 : index
    %0 = vector.load %arg1[%c0, %c0_0, %c0_1] : memref<2x11x32xbf16, #tpu.memory_space<vmem>>, vector<2x8x32xbf16>
    %c0_2 = arith.constant 0 : index
    %c0_3 = arith.constant 0 : index
    %c0_4 = arith.constant 0 : index
    %1 = vector.load %arg2[%c0_2, %c0_3, %c0_4] : memref<4x32x32xbf16, #tpu.memory_space<vmem>>, vector<1x32x32xbf16>
    %2 = vector.shape_cast %1 : vector<1x32x32xbf16> to vector<32x32xbf16>
    %cst = arith.constant dense<0.000000e+00> : vector<2x8x32xf32>
    %3 = tpu.matmul %0, %2, %cst {dimension_numbers = #tpu.dot_dimension_numbers<[2], [0], [0, 1], [1], [0, 0, 0, 1, 1, 1], [], []>} : vector<2x8x32xbf16>, vector<32x32xbf16>, vector<2x8x32xf32> -> vector<2x8x32xf32>
    %c0_5 = arith.constant 0 : index
    %c1 = arith.constant 1 : index
    %c0_6 = arith.constant 0 : index
    %4 = vector.load %arg1[%c0_5, %c1, %c0_6] : memref<2x11x32xbf16, #tpu.memory_space<vmem>>, vector<2x8x32xbf16>
    %c1_7 = arith.constant 1 : index
    %c0_8 = arith.constant 0 : index
    %c0_9 = arith.constant 0 : index
    %5 = vector.load %arg2[%c1_7, %c0_8, %c0_9] : memref<4x32x32xbf16, #tpu.memory_space<vmem>>, vector<1x32x32xbf16>
    %6 = vector.shape_cast %5 : vector<1x32x32xbf16> to vector<32x32xbf16>
    %cst_10 = arith.constant dense<0.000000e+00> : vector<2x8x32xf32>
    %7 = tpu.matmul %4, %6, %cst_10 {dimension_numbers = #tpu.dot_dimension_numbers<[2], [0], [0, 1], [1], [0, 0, 0, 1, 1, 1], [], []>} : vector<2x8x32xbf16>, vector<32x32xbf16>, vector<2x8x32xf32> -> vector<2x8x32xf32>
    %8 = arith.addf %3, %7 : vector<2x8x32xf32>
    %c0_11 = arith.constant 0 : index
    %c2 = arith.constant 2 : index
    %c0_12 = arith.constant 0 : index
    %9 = vector.load %arg1[%c0_11, %c2, %c0_12] : memref<2x11x32xbf16, #tpu.memory_space<vmem>>, vector<2x8x32xbf16>
    %c2_13 = arith.constant 2 : index
    %c0_14 = arith.constant 0 : index
    %c0_15 = arith.constant 0 : index
    %10 = vector.load %arg2[%c2_13, %c0_14, %c0_15] : memref<4x32x32xbf16, #tpu.memory_space<vmem>>, vector<1x32x32xbf16>
    %11 = vector.shape_cast %10 : vector<1x32x32xbf16> to vector<32x32xbf16>
    %cst_16 = arith.constant dense<0.000000e+00> : vector<2x8x32xf32>
    %12 = tpu.matmul %9, %11, %cst_16 {dimension_numbers = #tpu.dot_dimension_numbers<[2], [0], [0, 1], [1], [0, 0, 0, 1, 1, 1], [], []>} : vector<2x8x32xbf16>, vector<32x32xbf16>, vector<2x8x32xf32> -> vector<2x8x32xf32>
    %13 = arith.addf %8, %12 : vector<2x8x32xf32>
    %c0_17 = arith.constant 0 : index
    %c3 = arith.constant 3 : index
    %c0_18 = arith.constant 0 : index
    %14 = vector.load %arg1[%c0_17, %c3, %c0_18] : memref<2x11x32xbf16, #tpu.memory_space<vmem>>, vector<2x8x32xbf16>
    %c3_19 = arith.constant 3 : index
    %c0_20 = arith.constant 0 : index
    %c0_21 = arith.constant 0 : index
    %15 = vector.load %arg2[%c3_19, %c0_20, %c0_21] : memref<4x32x32xbf16, #tpu.memory_space<vmem>>, vector<1x32x32xbf16>
    %16 = vector.shape_cast %15 : vector<1x32x32xbf16> to vector<32x32xbf16>
    %cst_22 = arith.constant dense<0.000000e+00> : vector<2x8x32xf32>
    %17 = tpu.matmul %14, %16, %cst_22 {dimension_numbers = #tpu.dot_dimension_numbers<[2], [0], [0, 1], [1], [0, 0, 0, 1, 1, 1], [], []>} : vector<2x8x32xbf16>, vector<32x32xbf16>, vector<2x8x32xf32> -> vector<2x8x32xf32>
    %18 = arith.addf %13, %17 : vector<2x8x32xf32>
    %19 = tpu.iota {dimensions = array<i32: 0>} : vector<8x32xi32>
    %c0_23 = arith.constant 0 : index
    %c0_24 = arith.constant 0 : index
    %20 = vector.load %arg4[%c0_23, %c0_24] : memref<1x32xi32, #tpu.memory_space<vmem>>, vector<1x32xi32>
    %c9_i32 = arith.constant 9 : i32
    %21 = vector.broadcast %c9_i32 : i32 to vector<1x32xi32>
    %22 = arith.subi %21, %20 : vector<1x32xi32>
    %23 = vector.broadcast %22 : vector<1x32xi32> to vector<8x32xi32>
    %24 = arith.cmpi slt, %19, %23 : vector<8x32xi32>
    %cst_25 = arith.constant 0.000000e+00 : f32
    %cst_26 = arith.constant -1.000000e+30 : f32
    %25 = vector.broadcast %cst_25 : f32 to vector<8x32xf32>
    %26 = vector.broadcast %cst_26 : f32 to vector<8x32xf32>
    %27 = arith.select %24, %25, %26 : vector<8x32xi1>, vector<8x32xf32>
    %28 = vector.shape_cast %27 : vector<8x32xf32> to vector<1x8x32xf32>
    %29 = vector.broadcast %28 : vector<1x8x32xf32> to vector<2x8x32xf32>
    %30 = arith.addf %18, %29 : vector<2x8x32xf32>
    %cst_27 = arith.constant dense<0xFF800000> : vector<2x32xf32>
    %31 = vector.multi_reduction <maximumf>, %30, %cst_27 [1] : vector<2x8x32xf32> to vector<2x32xf32>
    %c0_28 = arith.constant 0 : index
    %c0_29 = arith.constant 0 : index
    %32 = vector.load %arg3[%c0_28, %c0_29] : memref<1x32xf32, #tpu.memory_space<vmem>>, vector<1x32xf32>
    %33 = vector.broadcast %32 : vector<1x32xf32> to vector<2x32xf32>
    %34 = arith.addf %31, %33 : vector<2x32xf32>
    %cst_30 = arith.constant 0.000000e+00 : f32
    %35 = vector.broadcast %cst_30 : f32 to vector<2x32xf32>
    %36 = arith.maximumf %34, %35 : vector<2x32xf32>
    %37 = arith.truncf %36 : vector<2x32xf32> to vector<2x32xbf16>
    %c0_31 = arith.constant 0 : index
    %c0_32 = arith.constant 0 : index
    %38 = vector.load %arg5[%c0_31, %c0_32] : memref<32x128xbf16, #tpu.memory_space<vmem>>, vector<32x128xbf16>
    %cst_33 = arith.constant dense<0.000000e+00> : vector<2x128xf32>
    %39 = tpu.matmul %37, %38, %cst_33 {dimension_numbers = #tpu.dot_dimension_numbers<[1], [0], [0], [1], [0, 0, 1, 1], [], []>} : vector<2x32xbf16>, vector<32x128xbf16>, vector<2x128xf32> -> vector<2x128xf32>
    %c0_34 = arith.constant 0 : index
    %c0_35 = arith.constant 0 : index
    %40 = vector.load %arg6[%c0_34, %c0_35] : memref<1x128xf32, #tpu.memory_space<vmem>>, vector<1x128xf32>
    %41 = vector.broadcast %40 : vector<1x128xf32> to vector<2x128xf32>
    %42 = arith.addf %39, %41 : vector<2x128xf32>
    %c0_36 = arith.constant 0 : index
    %c0_37 = arith.constant 0 : index
    %c0_38 = arith.constant 0 : index
    %43 = vector.load %arg7[%c0_36, %c0_37, %c0_38] : memref<1x2x128xf32, #tpu.memory_space<vmem>>, vector<1x2x128xf32>
    %44 = vector.shape_cast %43 : vector<1x2x128xf32> to vector<2x128xf32>
    %45 = vector.shape_cast %42 : vector<2x128xf32> to vector<1x2x128xf32>
    tpu.vector_store %arg7[%c0_36, %c0_37, %c0_38], %45 {strides = array<i32>} : memref<1x2x128xf32, #tpu.memory_space<vmem>>, vector<1x2x128xf32>,
    return
  }
  func.func @transform_0(%arg0: i32) -> (i32, i32, i32) {
    %c0_i32 = arith.constant 0 : i32
    %c0_i32_0 = arith.constant 0 : i32
    %c0_i32_1 = arith.constant 0 : i32
    return %arg0, %c0_i32, %c0_i32_0 : i32, i32, i32
  }
  func.func @transform_1(%arg0: i32) -> (i32, i32, i32) {
    %c0_i32 = arith.constant 0 : i32
    %c0_i32_0 = arith.constant 0 : i32
    %c0_i32_1 = arith.constant 0 : i32
    %c0_i32_2 = arith.constant 0 : i32
    return %c0_i32, %c0_i32_0, %c0_i32_1 : i32, i32, i32
  }
  func.func @transform_2(%arg0: i32) -> (i32, i32) {
    %c0_i32 = arith.constant 0 : i32
    %c0_i32_0 = arith.constant 0 : i32
    %c0_i32_1 = arith.constant 0 : i32
    return %c0_i32, %c0_i32_0 : i32, i32
  }
  func.func @transform_3(%arg0: i32) -> (i32, i32) {
    %c0_i32 = arith.constant 0 : i32
    %c0_i32_0 = arith.constant 0 : i32
    %c0_i32_1 = arith.constant 0 : i32
    return %c0_i32, %c0_i32_0 : i32, i32
  }
  func.func @transform_4(%arg0: i32) -> (i32, i32) {
    %c0_i32 = arith.constant 0 : i32
    %c0_i32_0 = arith.constant 0 : i32
    %c0_i32_1 = arith.constant 0 : i32
    return %c0_i32, %c0_i32_0 : i32, i32
  }
  func.func @transform_5(%arg0: i32) -> (i32, i32) {
    %c0_i32 = arith.constant 0 : i32
    %c0_i32_0 = arith.constant 0 : i32
    %c0_i32_1 = arith.constant 0 : i32
    return %c0_i32, %c0_i32_0 : i32, i32
  }
  func.func @transform_6(%arg0: i32) -> (i32, i32, i32) {
    %c0_i32 = arith.constant 0 : i32
    %c0_i32_0 = arith.constant 0 : i32
    %c0_i32_1 = arith.constant 0 : i32
    return %arg0, %c0_i32, %c0_i32_0 : i32, i32, i32
  }
}

</mosaic_0001>

<llo_original>
// kernel: tpu_custom_call.1
$region0: #{tpu_custom_call.1}
  #allocation0 [shape = 'u32[]', space=smem, size = 0x4, offset = 0x4, fixed_abs, tag = 'smem constant byte address 0x4 - core index']
  #allocation1 [shape = 'u32[144,128]{1,0:T(1,128)}', space=vmem, size = 0x12000, scoped, tag = 'internal scratch']
  %s0 = inlined_call_operand.vmem [shape: bf16[4,11,32], index: 0, kind: input, shape index: {}]
  %s1 = inlined_call_operand.hbm [shape: bf16[4,32,32], index: 1, kind: input, shape index: {}]
  %s2 = inlined_call_operand.vmem [shape: f32[1,32], index: 2, kind: input, shape index: {}]
  %s3 = inlined_call_operand.vmem [shape: s32[1,32], index: 3, kind: input, shape index: {}]
  %s4 = inlined_call_operand.vmem [shape: bf16[32,128], index: 4, kind: input, shape index: {}]
  %s5 = inlined_call_operand.vmem [shape: f32[1,128], index: 5, kind: input, shape index: {}]
  %s6 = inlined_call_operand.hbm [shape: f32[2,2,128], index: 6, kind: output, shape index: {}]
  %s7 = sld [smem:[#allocation0]]
  $region61: #{tpu_custom_call.1} parent=0
    _
  %s9 = ssub.s32 1, %s7
  %s10 = scalar_select 0, %s9, %s7
  $region1: #{tpu_custom_call.1} parent=0
    #allocation2 [shape = 'u8[32768]{0}', space=vmem, size = 0x8000, scoped, tag = 'input window, operand 1, single buffered']
    #allocation3 [shape = 's32[2]{0}', space=sflag, size = 0x8, scoped, tag = 'scoped memory for tpu_custom_call.1']
    #allocation4 [shape = 's32[2]{0}', space=sflag, size = 0x8, scoped, tag = 'scoped memory for tpu_custom_call.1']
    #allocation5 [shape = 'u8[2048]{0}', space=vmem, size = 0x800, scoped, tag = 'output window, operand 0']
    %11 = vsyncpa [#allocation3], 0
    %12 = vsyncpa [#allocation4], 0
    %s13 = scalar_lea.sflag [#allocation4], 1
    %14 = vsyncpa %s13, 0
    loop: start=0, step=1, limit=4
    $region2: #{tpu_custom_call.1} parent=1 // loop_pre_header
      _
    $region3: #{tpu_custom_call.1} parent=1 // loop_header
      %s16 = sphi 0, %s20
      %p17 = scmp.ge.s32.totalorder %s16, 4
      %s26 = sphi 0, %s28
      %s29 = sphi 0, %s26
      %s30 = sphi 0, %s29
      %s46 = sphi 0, %s30
      %s50 = sphi 0, %s50
      %s52 = sphi 0, %s50
      %s53 = sphi 0, %s52
      %s67 = sphi 0, %s53
      %s71 = sphi 0, %s71
      %s73 = sphi 0, %s71
      %s74 = sphi 0, %s73
      %s88 = sphi 0, %s74
      %s92 = sphi 0, %s92
      %s94 = sphi 0, %s92
      %s95 = sphi 0, %s94
      %s109 = sphi 0, %s95
      %s113 = sphi 0, %s113
      %s115 = sphi 0, %s113
      %s116 = sphi 0, %s115
      %s130 = sphi 0, %s116
      %s134 = sphi 0, %s134
      %s136 = sphi 0, %s134
      %s137 = sphi 0, %s136
      %s151 = sphi 0, %s137
      %s157 = sphi 0, %s159
      %s160 = sphi 0, %s157
      %s161 = sphi 0, %s160
      %s177 = sphi 0, %s161
    $region4: #{tpu_custom_call.1} parent=1 // loop_header_branch
      %19 = sbr.rel (%p17) target = $region8
    $region5: #{tpu_custom_call.1} parent=1 // loop_body
      %s21 = ssub.s32 %s16, 1
      %s22 = ssub.s32 %s16, 2
      %s23 = sadd.s32 %s16, 1
      %s24 = ssub.s32 %s16, %s23
      %p25 = scmp.eq.s32.totalorder %s24, 0
      %s27 = sadd.s32 %s26, 1
      %s28 = scalar_select %p25, %s26, %s27
      %p31 = pneg %p25
      %p32 = scmp.eq.s32.totalorder %s16, 1
      %p33 = por %p31, %p32
      %p34 = scmp.ne.s32.totalorder %s26, %s29
      %p35 = scmp.eq.s32.totalorder %s16, 0
      %p36 = por %p34, %p35
      %p37 = scmp.ne.s32.totalorder %s26, %s29
      %p38 = scmp.eq.s32.totalorder %s21, 1
      %p39 = por %p37, %p38
      %p40 = scmp.ne.s32.totalorder %s29, %s30
      %p41 = scmp.eq.s32.totalorder %s21, 0
      %p42 = por %p40, %p41
      %p43 = scmp.ne.s32.totalorder %s29, %s30
      %p44 = scmp.eq.s32.totalorder %s22, 1
      %p45 = por %p43, %p44
      %p47 = scmp.ne.s32.totalorder %s30, %s46
      %p48 = scmp.eq.s32.totalorder %s22, 0
      %p49 = por %p47, %p48
      %s51 = sadd.s32 %s50, 1
      %p54 = scmp.eq.s32.totalorder %s16, 1
      %p55 = scmp.ne.s32.totalorder %s50, %s52
      %p56 = scmp.eq.s32.totalorder %s16, 0
      %p57 = por %p55, %p56
      %p58 = scmp.ne.s32.totalorder %s50, %s52
      %p59 = scmp.eq.s32.totalorder %s21, 1
      %p60 = por %p58, %p59
      %p61 = scmp.ne.s32.totalorder %s52, %s53
      %p62 = scmp.eq.s32.totalorder %s21, 0
      %p63 = por %p61, %p62
      %p64 = scmp.ne.s32.totalorder %s52, %s53
      %p65 = scmp.eq.s32.totalorder %s22, 1
      %p66 = por %p64, %p65
      %p68 = scmp.ne.s32.totalorder %s53, %s67
      %p69 = scmp.eq.s32.totalorder %s22, 0
      %p70 = por %p68, %p69
      %s72 = sadd.s32 %s71, 1
      %p75 = scmp.eq.s32.totalorder %s16, 1
      %p76 = scmp.ne.s32.totalorder %s71, %s73
      %p77 = scmp.eq.s32.totalorder %s16, 0
      %p78 = por %p76, %p77
      %p79 = scmp.ne.s32.totalorder %s71, %s73
      %p80 = scmp.eq.s32.totalorder %s21, 1
      %p81 = por %p79, %p80
      %p82 = scmp.ne.s32.totalorder %s73, %s74
      %p83 = scmp.eq.s32.totalorder %s21, 0
      %p84 = por %p82, %p83
      %p85 = scmp.ne.s32.totalorder %s73, %s74
      %p86 = scmp.eq.s32.totalorder %s22, 1
      %p87 = por %p85, %p86
      %p89 = scmp.ne.s32.totalorder %s74, %s88
      %p90 = scmp.eq.s32.totalorder %s22, 0
      %p91 = por %p89, %p90
      %s93 = sadd.s32 %s92, 1
      %p96 = scmp.eq.s32.totalorder %s16, 1
      %p97 = scmp.ne.s32.totalorder %s92, %s94
      %p98 = scmp.eq.s32.totalorder %s16, 0
      %p99 = por %p97, %p98
      %p100 = scmp.ne.s32.totalorder %s92, %s94
      %p101 = scmp.eq.s32.totalorder %s21, 1
      %p102 = por %p100, %p101
      %p103 = scmp.ne.s32.totalorder %s94, %s95
      %p104 = scmp.eq.s32.totalorder %s21, 0
      %p105 = por %p103, %p104
      %p106 = scmp.ne.s32.totalorder %s94, %s95
      %p107 = scmp.eq.s32.totalorder %s22, 1
      %p108 = por %p106, %p107
      %p110 = scmp.ne.s32.totalorder %s95, %s109
      %p111 = scmp.eq.s32.totalorder %s22, 0
      %p112 = por %p110, %p111
      %s114 = sadd.s32 %s113, 1
      %p117 = scmp.eq.s32.totalorder %s16, 1
      %p118 = scmp.ne.s32.totalorder %s113, %s115
      %p119 = scmp.eq.s32.totalorder %s16, 0
      %p120 = por %p118, %p119
      %p121 = scmp.ne.s32.totalorder %s113, %s115
      %p122 = scmp.eq.s32.totalorder %s21, 1
      %p123 = por %p121, %p122
      %p124 = scmp.ne.s32.totalorder %s115, %s116
      %p125 = scmp.eq.s32.totalorder %s21, 0
      %p126 = por %p124, %p125
      %p127 = scmp.ne.s32.totalorder %s115, %s116
      %p128 = scmp.eq.s32.totalorder %s22, 1
      %p129 = por %p127, %p128
      %p131 = scmp.ne.s32.totalorder %s116, %s130
      %p132 = scmp.eq.s32.totalorder %s22, 0
      %p133 = por %p131, %p132
      %s135 = sadd.s32 %s134, 1
      %p138 = scmp.eq.s32.totalorder %s16, 1
      %p139 = scmp.ne.s32.totalorder %s134, %s136
      %p140 = scmp.eq.s32.totalorder %s16, 0
      %p141 = por %p139, %p140
      %p142 = scmp.ne.s32.totalorder %s134, %s136
      %p143 = scmp.eq.s32.totalorder %s21, 1
      %p144 = por %p142, %p143
      %p145 = scmp.ne.s32.totalorder %s136, %s137
      %p146 = scmp.eq.s32.totalorder %s21, 0
      %p147 = por %p145, %p146
      %p148 = scmp.ne.s32.totalorder %s136, %s137
      %p149 = scmp.eq.s32.totalorder %s22, 1
      %p150 = por %p148, %p149
      %p152 = scmp.ne.s32.totalorder %s137, %s151
      %p153 = scmp.eq.s32.totalorder %s22, 0
      %p154 = por %p152, %p153
      %s155 = ssub.s32 %s16, %s23
      %p156 = scmp.eq.s32.totalorder %s155, 0
      %s158 = sadd.s32 %s157, 1
      %s159 = scalar_select %p156, %s157, %s158
      %p162 = pneg %p156
      %p163 = scmp.eq.s32.totalorder %s16, 1
      %p164 = por %p162, %p163
      %p165 = scmp.ne.s32.totalorder %s157, %s160
      %p166 = scmp.eq.s32.totalorder %s16, 0
      %p167 = por %p165, %p166
      %p168 = scmp.ne.s32.totalorder %s157, %s160
      %p169 = scmp.eq.s32.totalorder %s21, 1
      %p170 = por %p168, %p169
      %p171 = scmp.ne.s32.totalorder %s160, %s161
      %p172 = scmp.eq.s32.totalorder %s21, 0
      %p173 = por %p171, %p172
      %p174 = scmp.ne.s32.totalorder %s160, %s161
      %p175 = scmp.eq.s32.totalorder %s22, 1
      %p176 = por %p174, %p175
      %p178 = scmp.ne.s32.totalorder %s161, %s177
      %p179 = scmp.eq.s32.totalorder %s22, 0
      %p180 = por %p178, %p179
      %p181 = scmp.le.s32.totalorder 1, %s16
      %p182 = scmp.lt.s32.totalorder %s16, 3
      %p183 = pnand %p181, %p182
      %p184 = pneg %p183
      // Predicated region
      $region9: #{tpu_custom_call.1} parent=5 // pred_check
        _
      $region10: #{tpu_custom_call.1} parent=5 // pred_check_branch
        %186 = sbr.rel (%p183) target = $region12
      $region11: #{tpu_custom_call.1} parent=5 // pred_region
        %s187 = ssub.s32 %s16, 1
        // Predicated region
        $region13: #{tpu_custom_call.1} parent=11 // pred_check
          %p188 = pneg %p63
        $region14: #{tpu_custom_call.1} parent=11 // pred_check_branch
          %190 = sbr.rel (%p188) target = $region16
        $region15: #{tpu_custom_call.1} parent=11 // pred_region
          %s192 = ssub.s32 1024, 1024
          %193 = vsyncadd [#allocation3], %s192
          %s194 = sshll.u32 [#allocation2], 4
          %s195 = int_to_ptr.vmem [resolvable:$true] %s194
          %200 = dma.hbm_to_vmem [thread:$0]  %s1, 1024, %s195, [#allocation3], 64, 64, 4
        $region16: #{tpu_custom_call.1} parent=11 // pred_fallthru
          _
        // Predicated region
        $region17: #{tpu_custom_call.1} parent=11 // pred_check
          %p201 = pneg %p84
        $region18: #{tpu_custom_call.1} parent=11 // pred_check_branch
          %203 = sbr.rel (%p201) target = $region20
        $region19: #{tpu_custom_call.1} parent=11 // pred_region
          _
        $region20: #{tpu_custom_call.1} parent=11 // pred_fallthru
          _
        // Predicated region
        $region21: #{tpu_custom_call.1} parent=11 // pred_check
          %p204 = pneg %p105
        $region22: #{tpu_custom_call.1} parent=11 // pred_check_branch
          %206 = sbr.rel (%p204) target = $region24
        $region23: #{tpu_custom_call.1} parent=11 // pred_region
          _
        $region24: #{tpu_custom_call.1} parent=11 // pred_fallthru
          _
        // Predicated region
        $region25: #{tpu_custom_call.1} parent=11 // pred_check
          %p207 = pneg %p126
        $region26: #{tpu_custom_call.1} parent=11 // pred_check_branch
          %209 = sbr.rel (%p207) target = $region28
        $region27: #{tpu_custom_call.1} parent=11 // pred_region
          _
        $region28: #{tpu_custom_call.1} parent=11 // pred_fallthru
          _
        // Predicated region
        $region29: #{tpu_custom_call.1} parent=11 // pred_check
          %p210 = pneg %p147
        $region30: #{tpu_custom_call.1} parent=11 // pred_check_branch
          %212 = sbr.rel (%p210) target = $region32
        $region31: #{tpu_custom_call.1} parent=11 // pred_region
          _
        $region32: #{tpu_custom_call.1} parent=11 // pred_fallthru
          _
      $region12: #{tpu_custom_call.1} parent=5 // pred_fallthru
        _
      %p213 = scmp.lt.s32.totalorder %s16, 2
      // Predicated region
      $region33: #{tpu_custom_call.1} parent=5 // pred_check
        %p214 = pneg %p213
      $region34: #{tpu_custom_call.1} parent=5 // pred_check_branch
        %216 = sbr.rel (%p214) target = $region36
      $region35: #{tpu_custom_call.1} parent=5 // pred_region
        // Predicated region
        $region37: #{tpu_custom_call.1} parent=35 // pred_check
          %p217 = pneg %p36
        $region38: #{tpu_custom_call.1} parent=35 // pred_check_branch
          %219 = sbr.rel (%p217) target = $region40
        $region39: #{tpu_custom_call.1} parent=35 // pred_region
          %s220 = smul.u32 2, %s16
          %p221 = scmp.lt.s32.totalorder %s220, 3
          %s222 = scalar_select %p221, %s220, 3
          %s223 = smul.addr %s222, 2
          %s224 = smul.addr %s223, 4
          %s225 = scalar_lea.vmem %s0, %s224
          %s226 = smul.u32 2, %s16
        $region40: #{tpu_custom_call.1} parent=35 // pred_fallthru
          _
      $region36: #{tpu_custom_call.1} parent=5 // pred_fallthru
        _
      %p227 = scmp.le.s32.totalorder 1, %s16
      %p228 = scmp.lt.s32.totalorder %s16, 3
      %p229 = pnand %p227, %p228
      %p230 = pneg %p229
      // Predicated region
      $region41: #{tpu_custom_call.1} parent=5 // pred_check
        _
      $region42: #{tpu_custom_call.1} parent=5 // pred_check_branch
        %232 = sbr.rel (%p229) target = $region44
      $region43: #{tpu_custom_call.1} parent=5 // pred_region
        %s233 = ssub.s32 %s16, 1
        // Predicated region
        $region45: #{tpu_custom_call.1} parent=43 // pred_check
          %p234 = pneg %p63
        $region46: #{tpu_custom_call.1} parent=43 // pred_check_branch
          %236 = sbr.rel (%p234) target = $region48
        $region47: #{tpu_custom_call.1} parent=43 // pred_region
          %237 = dma.done [#allocation3], 1024
        $region48: #{tpu_custom_call.1} parent=43 // pred_fallthru
          _
        %s238 = smul.u32 2, %s21
        %p239 = scmp.lt.s32.totalorder %s238, 3
        %s240 = scalar_select %p239, %s238, 3
        %s241 = smul.addr %s240, 2
        %s242 = smul.addr %s241, 4
        %s243 = scalar_lea.vmem %s0, %s242
        %p244 = pneg %p42
        %p245 = pneg %p39
        %p246 = pneg %p63
        %p247 = pneg %p60
        %p248 = pneg %p84
        %p249 = pneg %p81
        %p250 = pneg %p105
        %p251 = pneg %p102
        %p252 = pneg %p126
        %p253 = pneg %p123
        %p254 = pneg %p147
        %p255 = pneg %p144
        %p256 = pneg %p173
        %p257 = pneg %p170
        %s258 = sand.u32 %s160, 1
        %s259 = scalar_lea.sflag [#allocation4], %s258
        %s260 = sand.u32 %s160, 1
        %s261 = smul.addr %s260, 2
        %s262 = scalar_lea.vmem [#allocation5], %s261
        %s263 = smul.u32 2, %s21
        %p264 = scmp.lt.s32.totalorder %s263, 3
        %s265 = scalar_select %p264, %s263, 3
        %s266 = smul.addr %s265, 2
        %s267 = smul.addr %s266, 4
        %s268 = scalar_lea.vmem %s0, %s267
        %s269 = smul.u32 2, %s21
        %v271 = vld [vmem:[%s268] sm:$0xf]
        %v272 = vld [vmem:[%s268 + $0x8] sm:$0xf]
        %v273 = vld [vmem:[#allocation2] sm:$0xf]
        %v274 = vld [vmem:[#allocation2 + $0x4] sm:$0xf]
        %v275 = vld [vmem:[#allocation2 + $0x8] sm:$0xf]
        %v276 = vld [vmem:[#allocation2 + $0xc] sm:$0xf]
        %v277 = vld [vmem:[%s268 + $0x4] sm:$0x1]
        %v278 = vld [vmem:[%s268 + $0xc] sm:$0x1]
        %s279 = scalar_lea.vmem [#allocation2], 16
        %v280 = vld [vmem:[%s279] sm:$0xf]
        %v281 = vld [vmem:[%s279 + $0x4] sm:$0xf]
        %v282 = vld [vmem:[%s279 + $0x8] sm:$0xf]
        %v283 = vld [vmem:[%s279 + $0xc] sm:$0xf]
        %vm284 = vsmask.f32 3328
        %vm285 = vsmask.f32 7440
        %vm286 = vmor %vm284, %vm285
        %v288 = vshrl.u32 %v271, 16
        %v290 = vrot.slane %v288, 4
        %v291 = vshll.u32 %v271, 16
        %v293 = vrot.slane %v291, 5
        %v294 = vor.u32 %v290, %v293
        %v295 = vrot.slane %v294, 4
        %v297 = vshll.u32 %v277, 16
        %v299 = vrot.slane %v297, 5
        %v300 = vsel %vm286, %v295, %v299
        %v302 = vshrl.u32 %v272, 16
        %v304 = vrot.slane %v302, 4
        %v305 = vshll.u32 %v272, 16
        %v307 = vrot.slane %v305, 5
        %v308 = vor.u32 %v304, %v307
        %v309 = vrot.slane %v308, 4
        %v311 = vshll.u32 %v278, 16
        %v313 = vrot.slane %v311, 5
        %v314 = vsel %vm286, %v309, %v313
        %v315 = vunpack.c.l.b16 %v300
        %v316 = vunpack.c.l.b16 %v314
        %v317 = vpack.c.b16 %v316, %v315
        %v322 = vunpack.c.l.b16 %v280
        %v323 = vunpack.c.l.b16 %v281
        %v324 = vunpack.c.l.b16 %v282
        %v325 = vunpack.c.l.b16 %v283
        %v326 = vpack.c.b16 %v323, %v322
        %v327 = vpack.c.b16 %v325, %v324
        %vm330 = vcmask 261120
        %v332 = vsel %vm330, %v317, 0
        %334 = vmatprep.subr.bf16.mxu0 0
        %335 = vmatpush1.bf16.msra.mxu0 0
        %336 = vmatprep.subr.bf16.mxu0 0
        %337 = vmatpush1.bf16.msra.mxu0 0
        %338 = vmatprep.subr.bf16.mxu0 0
        %339 = vmatpush1.bf16.msra.mxu0 0
        %340 = vmatprep.subr.bf16.mxu0 0
        %341 = vmatpush1.bf16.msra.mxu0 0
        %342 = vmatprep.subr.bf16.mxu0 0
        %343 = vmatpush1.bf16.msra.mxu0 0
        %344 = vmatprep.subr.bf16.mxu0 0
        %345 = vmatpush1.bf16.msra.mxu0 0
        %346 = vmatprep.subr.bf16.mxu0 0
        %347 = vmatpush1.bf16.msra.mxu0 %v327
        %348 = vmatprep.subr.bf16.mxu0 0
        %349 = vmatpush1.bf16.msra.mxu0 %v326
        %350 = vmatprep.subr.bf16.mxu0 0
        %351 = vmatpush2.bf16.msra.mxu0 0
        %352 = vmatprep.subr.bf16.mxu0 0
        %353 = vmatpush2.bf16.msra.mxu0 0
        %354 = vmatprep.subr.bf16.mxu0 0
        %355 = vmatpush2.bf16.msra.mxu0 0
        %356 = vmatprep.subr.bf16.mxu0 0
        %357 = vmatpush2.bf16.msra.mxu0 0
        %358 = vmatprep.subr.bf16.mxu0 0
        %359 = vmatpush2.bf16.msra.mxu0 0
        %360 = vmatprep.subr.bf16.mxu0 0
        %361 = vmatpush2.bf16.msra.mxu0 0
        %362 = vmatprep.subr.bf16.mxu0 0
        %363 = vmatpush2.bf16.msra.mxu0 0
        %364 = vmatprep.subr.bf16.mxu0 0
        %365 = vmatpush2.bf16.msra.mxu0 0
        %366 = vmatprep.mubr.bf16.mxu0 0
        %367 = vmatmul.mubr.bf16.gmra.mxu0 %v332
        %v368 = vpop.f32.mrf.mxu0
        %v369 = vadd.f32 0.0, %v368
        %v370 = vpop.f32.mrf.mxu0
        %v371 = vpop.f32.mrf.mxu0
        %v372 = vadd.f32 0.0, %v371
        %v373 = vpop.f32.mrf.mxu0
        %374 = vdwg.mxu0
        %v377 = vunpack.c.l.b16 %v271
        %v378 = vunpack.c.l.b16 %v272
        %v379 = vpack.c.b16 %v378, %v377
        %v384 = vunpack.c.l.b16 %v273
        %v385 = vunpack.c.l.b16 %v274
        %v386 = vunpack.c.l.b16 %v275
        %v387 = vunpack.c.l.b16 %v276
        %v388 = vpack.c.b16 %v385, %v384
        %v389 = vpack.c.b16 %v387, %v386
        %v393 = vsel %vm330, %v379, 0
        %395 = vmatprep.subr.bf16.mxu0 0
        %396 = vmatpush1.bf16.msra.mxu0 0
        %397 = vmatprep.subr.bf16.mxu0 0
        %398 = vmatpush1.bf16.msra.mxu0 0
        %399 = vmatprep.subr.bf16.mxu0 0
        %400 = vmatpush1.bf16.msra.mxu0 0
        %401 = vmatprep.subr.bf16.mxu0 0
        %402 = vmatpush1.bf16.msra.mxu0 0
        %403 = vmatprep.subr.bf16.mxu0 0
        %404 = vmatpush1.bf16.msra.mxu0 0
        %405 = vmatprep.subr.bf16.mxu0 0
        %406 = vmatpush1.bf16.msra.mxu0 0
        %407 = vmatprep.subr.bf16.mxu0 0
        %408 = vmatpush1.bf16.msra.mxu0 %v389
        %409 = vmatprep.subr.bf16.mxu0 0
        %410 = vmatpush1.bf16.msra.mxu0 %v388
        %411 = vmatprep.subr.bf16.mxu0 0
        %412 = vmatpush2.bf16.msra.mxu0 0
        %413 = vmatprep.subr.bf16.mxu0 0
        %414 = vmatpush2.bf16.msra.mxu0 0
        %415 = vmatprep.subr.bf16.mxu0 0
        %416 = vmatpush2.bf16.msra.mxu0 0
        %417 = vmatprep.subr.bf16.mxu0 0
        %418 = vmatpush2.bf16.msra.mxu0 0
        %419 = vmatprep.subr.bf16.mxu0 0
        %420 = vmatpush2.bf16.msra.mxu0 0
        %421 = vmatprep.subr.bf16.mxu0 0
        %422 = vmatpush2.bf16.msra.mxu0 0
        %423 = vmatprep.subr.bf16.mxu0 0
        %424 = vmatpush2.bf16.msra.mxu0 0
        %425 = vmatprep.subr.bf16.mxu0 0
        %426 = vmatpush2.bf16.msra.mxu0 0
        %427 = vmatprep.mubr.bf16.mxu0 0
        %428 = vmatmul.mubr.bf16.gmra.mxu0 %v393
        %v429 = vpop.f32.mrf.mxu0
        %v430 = vadd.f32 %v369, %v429
        %v431 = vpop.f32.mrf.mxu0
        %v432 = vpop.f32.mrf.mxu0
        %v433 = vadd.f32 %v372, %v432
        %v434 = vpop.f32.mrf.mxu0
        %435 = vdwg.mxu0
        %v436 = vld [vmem:[%s268] sm:$0xe]
        %v437 = vld [vmem:[%s268 + $0x8] sm:$0xe]
        %s438 = scalar_lea.vmem [#allocation2], 32
        %v439 = vld [vmem:[%s438] sm:$0xf]
        %v440 = vld [vmem:[%s438 + $0x4] sm:$0xf]
        %v441 = vld [vmem:[%s438 + $0x8] sm:$0xf]
        %v442 = vld [vmem:[%s438 + $0xc] sm:$0xf]
        %vm447 = vcmask 1042432
        %vm448 = vcmask 1046532
        %vm449 = vmor %vm447, %vm448
        %v450 = vrot.slane %v436, 5
        %v451 = vrot.slane %v450, 4
        %v452 = vrot.slane %v277, 5
        %v453 = vsel %vm449, %v451, %v452
        %v454 = vrot.slane %v437, 5
        %v455 = vrot.slane %v454, 4
        %v456 = vrot.slane %v278, 5
        %v457 = vsel %vm449, %v455, %v456
        %v458 = vunpack.c.l.b16 %v453
        %v459 = vunpack.c.l.b16 %v457
        %v460 = vpack.c.b16 %v459, %v458
        %v465 = vunpack.c.l.b16 %v439
        %v466 = vunpack.c.l.b16 %v440
        %v467 = vunpack.c.l.b16 %v441
        %v468 = vunpack.c.l.b16 %v442
        %v469 = vpack.c.b16 %v466, %v465
        %v470 = vpack.c.b16 %v468, %v467
        %v474 = vsel %vm330, %v460, 0
        %476 = vmatprep.subr.bf16.mxu0 0
        %477 = vmatpush1.bf16.msra.mxu0 0
        %478 = vmatprep.subr.bf16.mxu0 0
        %479 = vmatpush1.bf16.msra.mxu0 0
        %480 = vmatprep.subr.bf16.mxu0 0
        %481 = vmatpush1.bf16.msra.mxu0 0
        %482 = vmatprep.subr.bf16.mxu0 0
        %483 = vmatpush1.bf16.msra.mxu0 0
        %484 = vmatprep.subr.bf16.mxu0 0
        %485 = vmatpush1.bf16.msra.mxu0 0
        %486 = vmatprep.subr.bf16.mxu0 0
        %487 = vmatpush1.bf16.msra.mxu0 0
        %488 = vmatprep.subr.bf16.mxu0 0
        %489 = vmatpush1.bf16.msra.mxu0 %v470
        %490 = vmatprep.subr.bf16.mxu0 0
        %491 = vmatpush1.bf16.msra.mxu0 %v469
        %492 = vmatprep.subr.bf16.mxu0 0
        %493 = vmatpush2.bf16.msra.mxu0 0
        %494 = vmatprep.subr.bf16.mxu0 0
        %495 = vmatpush2.bf16.msra.mxu0 0
        %496 = vmatprep.subr.bf16.mxu0 0
        %497 = vmatpush2.bf16.msra.mxu0 0
        %498 = vmatprep.subr.bf16.mxu0 0
        %499 = vmatpush2.bf16.msra.mxu0 0
        %500 = vmatprep.subr.bf16.mxu0 0
        %501 = vmatpush2.bf16.msra.mxu0 0
        %502 = vmatprep.subr.bf16.mxu0 0
        %503 = vmatpush2.bf16.msra.mxu0 0
        %504 = vmatprep.subr.bf16.mxu0 0
        %505 = vmatpush2.bf16.msra.mxu0 0
        %506 = vmatprep.subr.bf16.mxu0 0
        %507 = vmatpush2.bf16.msra.mxu0 0
        %508 = vmatprep.mubr.bf16.mxu0 0
        %509 = vmatmul.mubr.bf16.gmra.mxu0 %v474
        %v510 = vpop.f32.mrf.mxu0
        %v511 = vadd.f32 0.0, %v510
        %v512 = vpop.f32.mrf.mxu0
        %v513 = vpop.f32.mrf.mxu0
        %v514 = vadd.f32 0.0, %v513
        %v515 = vpop.f32.mrf.mxu0
        %516 = vdwg.mxu0
        %v517 = vadd.f32 %v430, %v511
        %v518 = vadd.f32 %v433, %v514
        %v519 = vld [vmem:[%s268 + $0x4] sm:$0x3]
        %v520 = vld [vmem:[%s268 + $0xc] sm:$0x3]
        %s521 = scalar_lea.vmem [#allocation2], 48
        %v522 = vld [vmem:[%s521] sm:$0xf]
        %v523 = vld [vmem:[%s521 + $0x4] sm:$0xf]
        %v524 = vld [vmem:[%s521 + $0x8] sm:$0xf]
        %v525 = vld [vmem:[%s521 + $0xc] sm:$0xf]
        %vm526 = vsmask.f32 2304
        %vm527 = vsmask.f32 6416
        %vm528 = vmor %vm526, %vm527
        %v530 = vshrl.u32 %v436, 16
        %v532 = vrot.slane %v530, 5
        %v533 = vshll.u32 %v436, 16
        %v535 = vrot.slane %v533, 6
        %v536 = vor.u32 %v532, %v535
        %v537 = vrot.slane %v536, 4
        %v539 = vshrl.u32 %v519, 16
        %v541 = vrot.slane %v539, 5
        %v542 = vshll.u32 %v519, 16
        %v544 = vrot.slane %v542, 6
        %v545 = vor.u32 %v541, %v544
        %v546 = vsel %vm528, %v537, %v545
        %v548 = vshrl.u32 %v437, 16
        %v550 = vrot.slane %v548, 5
        %v551 = vshll.u32 %v437, 16
        %v553 = vrot.slane %v551, 6
        %v554 = vor.u32 %v550, %v553
        %v555 = vrot.slane %v554, 4
        %v557 = vshrl.u32 %v520, 16
        %v559 = vrot.slane %v557, 5
        %v560 = vshll.u32 %v520, 16
        %v562 = vrot.slane %v560, 6
        %v563 = vor.u32 %v559, %v562
        %v564 = vsel %vm528, %v555, %v563
        %v565 = vunpack.c.l.b16 %v546
        %v566 = vunpack.c.l.b16 %v564
        %v567 = vpack.c.b16 %v566, %v565
        %v572 = vunpack.c.l.b16 %v522
        %v573 = vunpack.c.l.b16 %v523
        %v574 = vunpack.c.l.b16 %v524
        %v575 = vunpack.c.l.b16 %v525
        %v576 = vpack.c.b16 %v573, %v572
        %v577 = vpack.c.b16 %v575, %v574
        %v581 = vsel %vm330, %v567, 0
        %583 = vmatprep.subr.bf16.mxu0 0
        %584 = vmatpush1.bf16.msra.mxu0 0
        %585 = vmatprep.subr.bf16.mxu0 0
        %586 = vmatpush1.bf16.msra.mxu0 0
        %587 = vmatprep.subr.bf16.mxu0 0
        %588 = vmatpush1.bf16.msra.mxu0 0
        %589 = vmatprep.subr.bf16.mxu0 0
        %590 = vmatpush1.bf16.msra.mxu0 0
        %591 = vmatprep.subr.bf16.mxu0 0
        %592 = vmatpush1.bf16.msra.mxu0 0
        %593 = vmatprep.subr.bf16.mxu0 0
        %594 = vmatpush1.bf16.msra.mxu0 0
        %595 = vmatprep.subr.bf16.mxu0 0
        %596 = vmatpush1.bf16.msra.mxu0 %v577
        %597 = vmatprep.subr.bf16.mxu0 0
        %598 = vmatpush1.bf16.msra.mxu0 %v576
        %599 = vmatprep.subr.bf16.mxu0 0
        %600 = vmatpush2.bf16.msra.mxu0 0
        %601 = vmatprep.subr.bf16.mxu0 0
        %602 = vmatpush2.bf16.msra.mxu0 0
        %603 = vmatprep.subr.bf16.mxu0 0
        %604 = vmatpush2.bf16.msra.mxu0 0
        %605 = vmatprep.subr.bf16.mxu0 0
        %606 = vmatpush2.bf16.msra.mxu0 0
        %607 = vmatprep.subr.bf16.mxu0 0
        %608 = vmatpush2.bf16.msra.mxu0 0
        %609 = vmatprep.subr.bf16.mxu0 0
        %610 = vmatpush2.bf16.msra.mxu0 0
        %611 = vmatprep.subr.bf16.mxu0 0
        %612 = vmatpush2.bf16.msra.mxu0 0
        %613 = vmatprep.subr.bf16.mxu0 0
        %614 = vmatpush2.bf16.msra.mxu0 0
        %615 = vmatprep.mubr.bf16.mxu0 0
        %616 = vmatmul.mubr.bf16.gmra.mxu0 %v581
        %v617 = vpop.f32.mrf.mxu0
        %v618 = vadd.f32 0.0, %v617
        %v619 = vpop.f32.mrf.mxu0
        %v620 = vpop.f32.mrf.mxu0
        %v621 = vadd.f32 0.0, %v620
        %v622 = vpop.f32.mrf.mxu0
        %623 = vdwg.mxu0
        %v624 = vadd.f32 %v517, %v618
        %v625 = vadd.f32 %v518, %v621
        %v626 = vlaneseq
        %v627 = vshrl.u32 %v626, 7
        %v628 = vld [vmem:[%s3] sm:$0x1]
        %v629 = vsub.s32 9, %v628
        %v630 = vlaneseq
        %v631 = vshrl.u32 %v630, 7
        %v632 = vsub.s32 0, %v631
        %v633 = vrot.slane %v629, %v632
        %vm634 = vcmp.lt.s32.totalorder %v627, %v633
        %v635 = vsel %vm634, 0.0, -1e+30
        %v636 = vadd.f32 %v624, %v635
        %v637 = vadd.f32 %v625, %v635
        %v638 = vsel %vm330, %v636, -inf
        %v639 = vrot.slane %v638, 4
        %v640 = vmax.f32 %v638, %v639
        %v641 = vrot.slane %v640, 2
        %v642 = vmax.f32 %v640, %v641
        %v643 = vrot.slane %v642, 1
        %v644 = vmax.f32 %v642, %v643
        %v645 = vsel %vm330, %v637, -inf
        %v646 = vrot.slane %v645, 4
        %v647 = vmax.f32 %v645, %v646
        %v648 = vrot.slane %v647, 2
        %v649 = vmax.f32 %v647, %v648
        %v650 = vrot.slane %v649, 1
        %v651 = vmax.f32 %v649, %v650
        %v652 = vld [vmem:[%s2] sm:$0x1]
        %v654 = vlaneseq
        %v655 = vshrl.u32 %v654, 7
        %v656 = vsub.s32 0, %v655
        %v657 = vrot.slane %v652, %v656
        %v659 = vadd.f32 %v644, %v657
        %v660 = vadd.f32 %v651, %v657
        %v661 = vmax.f32 %v659, 0.0
        %v662 = vmax.f32 %v660, 0.0
        %v663 = vpack.c.bf16 %v661, %v661
        %v664 = vpack.c.bf16 %v662, %v662
        %v665 = vld [vmem:[%s4] sm:$0xf]
        %v666 = vld [vmem:[%s4 + $0x4] sm:$0xf]
        %v667 = vld [vmem:[%s4 + $0x8] sm:$0xf]
        %v668 = vld [vmem:[%s4 + $0xc] sm:$0xf]
        %v669 = vld [vmem:[%s5] sm:$0x1]
        %v671 = vlaneseq
        %v672 = vshrl.u32 %v671, 7
        %v673 = vsub.s32 0, %v672
        %v674 = vrot.slane %v669, %v673
        %v678 = vunpack.c.l.b16 %v663
        %v679 = vunpack.c.l.b16 %v664
        %v680 = vrot.slane %v679, 7
        %vm681 = vcmask 1041409
        %v682 = vsel %vm681, %v680, %v678
        %v683 = vpack.c.b16 %v682, %v682
        %v688 = vunpack.c.l.b16 %v665
        %v689 = vunpack.c.l.b16 %v666
        %v690 = vunpack.c.l.b16 %v667
        %v691 = vunpack.c.l.b16 %v668
        %v692 = vpack.c.b16 %v689, %v688
        %v693 = vpack.c.b16 %v691, %v690
        %v697 = vsel %vm330, %v683, 0
        %699 = vmatprep.subr.bf16.mxu0 0
        %700 = vmatpush1.bf16.msra.mxu0 0
        %701 = vmatprep.subr.bf16.mxu0 0
        %702 = vmatpush1.bf16.msra.mxu0 0
        %703 = vmatprep.subr.bf16.mxu0 0
        %704 = vmatpush1.bf16.msra.mxu0 0
        %705 = vmatprep.subr.bf16.mxu0 0
        %706 = vmatpush1.bf16.msra.mxu0 0
        %707 = vmatprep.subr.bf16.mxu0 0
        %708 = vmatpush1.bf16.msra.mxu0 0
        %709 = vmatprep.subr.bf16.mxu0 0
        %710 = vmatpush1.bf16.msra.mxu0 0
        %711 = vmatprep.subr.bf16.mxu0 0
        %712 = vmatpush1.bf16.msra.mxu0 %v693
        %713 = vmatprep.subr.bf16.mxu0 0
        %714 = vmatpush1.bf16.msra.mxu0 %v692
        %715 = vmatprep.subr.bf16.mxu0 0
        %716 = vmatpush2.bf16.msra.mxu0 0
        %717 = vmatprep.subr.bf16.mxu0 0
        %718 = vmatpush2.bf16.msra.mxu0 0
        %719 = vmatprep.subr.bf16.mxu0 0
        %720 = vmatpush2.bf16.msra.mxu0 0
        %721 = vmatprep.subr.bf16.mxu0 0
        %722 = vmatpush2.bf16.msra.mxu0 0
        %723 = vmatprep.subr.bf16.mxu0 0
        %724 = vmatpush2.bf16.msra.mxu0 0
        %725 = vmatprep.subr.bf16.mxu0 0
        %726 = vmatpush2.bf16.msra.mxu0 0
        %727 = vmatprep.subr.bf16.mxu0 0
        %728 = vmatpush2.bf16.msra.mxu0 0
        %729 = vmatprep.subr.bf16.mxu0 0
        %730 = vmatpush2.bf16.msra.mxu0 0
        %731 = vmatprep.mubr.bf16.mxu0 0
        %732 = vmatmul.mubr.bf16.gmra.mxu0 %v697
        %v733 = vpop.f32.mrf.mxu0
        %v734 = vadd.f32 %v674, %v733
        %v735 = vpop.f32.mrf.mxu0
        %v736 = vpop.f32.mrf.mxu0
        %v737 = vpop.f32.mrf.mxu0
        %738 = vdwg.mxu0
        %739 = vst [vmem:[%s262] sm:$0x3] %v734
        %s740 = sand.u32 %s160, 1
        %s741 = scalar_lea.sflag [#allocation4], %s740
        %s742 = sand.u32 %s160, 1
        %s743 = smul.addr %s742, 2
        %s744 = scalar_lea.vmem [#allocation5], %s743
        // Predicated region
        $region49: #{tpu_custom_call.1} parent=43 // pred_check
          %p745 = pneg %p170
        $region50: #{tpu_custom_call.1} parent=43 // pred_check_branch
          %747 = sbr.rel (%p745) target = $region52
        $region51: #{tpu_custom_call.1} parent=43 // pred_region
          %s749 = ssub.s32 32, 32
          %750 = vsyncadd %s741, %s749
          %s751 = smul.addr %s21, 32
          %s752 = scalar_lea.hbm %s6, %s751
          %s754 = sshll.u32 %s744, 4
          %s755 = int_to_ptr.vmem [resolvable:$true] %s754
          %757 = dma.vmem_to_hbm [thread:$0]  %s755, 32, %s752, %s741
        $region52: #{tpu_custom_call.1} parent=43 // pred_fallthru
          _
      $region44: #{tpu_custom_call.1} parent=5 // pred_fallthru
        _
      %p758 = scmp.le.s32.totalorder 2, %s16
      // Predicated region
      $region53: #{tpu_custom_call.1} parent=5 // pred_check
        %p759 = pneg %p758
      $region54: #{tpu_custom_call.1} parent=5 // pred_check_branch
        %761 = sbr.rel (%p759) target = $region56
      $region55: #{tpu_custom_call.1} parent=5 // pred_region
        %s762 = ssub.s32 %s16, 2
        // Predicated region
        $region57: #{tpu_custom_call.1} parent=55 // pred_check
          %p763 = pneg %p176
        $region58: #{tpu_custom_call.1} parent=55 // pred_check_branch
          %765 = sbr.rel (%p763) target = $region60
        $region59: #{tpu_custom_call.1} parent=55 // pred_region
          %s766 = sand.u32 %s161, 1
          %s767 = scalar_lea.sflag [#allocation4], %s766
          %s768 = sand.u32 %s161, 1
          %s769 = smul.addr %s768, 2
          %s770 = scalar_lea.vmem [#allocation5], %s769
          %771 = dma.done %s767, 32
        $region60: #{tpu_custom_call.1} parent=55 // pred_fallthru
          _
      $region56: #{tpu_custom_call.1} parent=5 // pred_fallthru
        _
    $region6: #{tpu_custom_call.1} parent=1 // loop_footer
      %s20 = sadd.s32 1, %s16
    $region7: #{tpu_custom_call.1} parent=1 // loop_footer_branch
      %15 = sbr.rel target = $region3
    $region8: #{tpu_custom_call.1} parent=1 // loop_exit
      _
    %772 = vsyncpa [#allocation3], 1
    %s773 = scalar_lea.sflag [#allocation3], 1
    %774 = vsyncpa %s773, 1
    %775 = vsyncpa [#allocation4], 1
    %s776 = scalar_lea.sflag [#allocation4], 1
    %777 = vsyncpa %s776, 1

</llo_original>
